<compile_context>
chip_gen: v7x
topology: tpu7x:2x2x1
jax: 0.10.0
libtpu: 0.0.40
codegen_flags: <defaults>
</compile_context>

<pallas_src>
import jax
import jax.numpy as jnp
from jax.experimental import pallas as pl
from jax.experimental.pallas import tpu as pltpu

# Logical (PyTorch) dims.
D_IN, D_H1, D_H2, D_OUT = 600, 300, 50, 2
# Lane-padded dims (multiples of 128).
D_IN_P, D_H1_P, D_H2_P, D_OUT_P = 640, 384, 128, 128


def _round_up(x, m):
    return ((x + m - 1) // m) * m


# --------------------------------------------------------------------------- #
# Pallas kernel: fused 3-layer MLP (matmul + bias + ReLU, three times)
# --------------------------------------------------------------------------- #
def mlp_kernel(x_ref, w1_ref, b1_ref, w2_ref, b2_ref, w3_ref, b3_ref, out_ref):
    # Layer 1: (tm, 640) @ (640, 384)  -- bf16 operands, f32 accumulate on the MXU.
    h = jnp.dot(x_ref[...], w1_ref[...], preferred_element_type=jnp.float32)
    h = jnp.maximum(h + b1_ref[...], 0.0)
    # Layer 2: (tm, 384) @ (384, 128)
    h = jnp.dot(h.astype(jnp.bfloat16), w2_ref[...],
                preferred_element_type=jnp.float32)
    h = jnp.maximum(h + b2_ref[...], 0.0)
    # Layer 3: (tm, 128) @ (128, 128) -> lane-dense (128-wide) output store.
    h = jnp.dot(h.astype(jnp.bfloat16), w3_ref[...],
                preferred_element_type=jnp.float32)
    out_ref[...] = jnp.maximum(h + b3_ref[...], 0.0)


def net_purchase_forward(params, x):
    """x: (B, 600) float32 -> logits (B, 2) float32 (ReLU'd, as in the module)."""
    B = x.shape[0]
    # M-tiling: small batches -> one 8-row tile; large batches -> 256-row tiles
    # pipelined over a "parallel" grid axis (megacore-shardable on v7x).
    tm = min(256, _round_up(B, 8))
    Bp = _round_up(B, tm)
    num_tiles = Bp // tm

    # Pad batch rows and input features with zeros; cast activations to bf16.
    x_pad = jnp.zeros((Bp, D_IN_P), jnp.bfloat16)
    x_pad = x_pad.at[:B, :D_IN].set(x.astype(jnp.bfloat16))

    w1, b1, w2, b2, w3, b3 = params

    out_pad = pl.pallas_call(
        mlp_kernel,
        grid=(num_tiles,),
        in_specs=[
            pl.BlockSpec((tm, D_IN_P), lambda i: (i, 0)),
            pl.BlockSpec((D_IN_P, D_H1_P), lambda i: (0, 0)),
            pl.BlockSpec((1, D_H1_P), lambda i: (0, 0)),
            pl.BlockSpec((D_H1_P, D_H2_P), lambda i: (0, 0)),
            pl.BlockSpec((1, D_H2_P), lambda i: (0, 0)),
            pl.BlockSpec((D_H2_P, D_OUT_P), lambda i: (0, 0)),
            pl.BlockSpec((1, D_OUT_P), lambda i: (0, 0)),
        ],
        out_specs=pl.BlockSpec((tm, D_OUT_P), lambda i: (i, 0)),
        out_shape=jax.ShapeDtypeStruct((Bp, D_OUT_P), jnp.float32),
        compiler_params=pltpu.CompilerParams(
            dimension_semantics=("parallel",),
        ),
    )(x_pad, w1, b1, w2, b2, w3, b3)

    # Drop batch / class padding (padded lanes are exactly zero by construction).
    return out_pad[:B, :D_OUT]


# --------------------------------------------------------------------------- #
# Deterministic parameter construction (PyTorch nn.Linear default init style)
# --------------------------------------------------------------------------- #
def _linear_params(key, fan_in, fan_out, k_pad, n_pad):
    kw, kb = jax.random.split(key)
    bound = 1.0 / (fan_in ** 0.5)
    # PyTorch Linear weight layout (out, in); transpose for right-matmul.
    w_torch = jax.random.uniform(kw, (fan_out, fan_in), jnp.float32, -bound, bound)
    b_torch = jax.random.uniform(kb, (fan_out,), jnp.float32, -bound, bound)
    # Zero-pad K and N to 128-lane multiples; padded entries are zero so the
    # padded columns/rows contribute nothing (exactness preserved).
    w_mat = jnp.zeros((k_pad, n_pad), jnp.float32)
    w_mat = w_mat.at[:fan_in, :fan_out].set(jnp.transpose(w_torch))
    b_row = jnp.zeros((1, n_pad), jnp.float32)
    b_row = b_row.at[0, :fan_out].set(b_torch)
    return w_mat.astype(jnp.bfloat16), b_row  # bf16 weights, f32 bias


def make_params(key):
    k1, k2, k3 = jax.random.split(key, 3)
    w1, b1 = _linear_params(k1, D_IN, D_H1, D_IN_P, D_H1_P)
    w2, b2 = _linear_params(k2, D_H1, D_H2, D_H1_P, D_H2_P)
    w3, b3 = _linear_params(k3, D_H2, D_OUT, D_H2_P, D_OUT_P)
    return (w1, b1, w2, b2, w3, b3)


if __name__ == "__main__":
    key = jax.random.PRNGKey(0)
    pkey, xkey = jax.random.split(key)
    params = make_params(pkey)
    # Small input consistent with the module: batch=2, 600 features.
    x = jax.random.normal(xkey, (2, D_IN), jnp.float32)
    fwd = jax.jit(net_purchase_forward)
    out = fwd(params, x)
    jax.block_until_ready(out)
    assert out.shape == (2, D_OUT)
    assert bool(jnp.all(jnp.isfinite(out)))
    assert bool(jnp.all(out >= 0.0))  # final ReLU, as in the module
    print("KERNEL_OK")
</pallas_src>

<mosaic_0001>
module attributes {stable_mosaic.version = 11 : i64} {
  func.func @mlp_kernel(%arg0: i32, %arg1: memref<8x640xbf16, #tpu.memory_space<vmem>>, %arg2: memref<640x384xbf16, #tpu.memory_space<vmem>>, %arg3: memref<1x384xf32, #tpu.memory_space<vmem>>, %arg4: memref<384x128xbf16, #tpu.memory_space<vmem>>, %arg5: memref<1x128xf32, #tpu.memory_space<vmem>>, %arg6: memref<128x128xbf16, #tpu.memory_space<vmem>>, %arg7: memref<1x128xf32, #tpu.memory_space<vmem>>, %arg8: memref<8x128xf32, #tpu.memory_space<vmem>>) attributes {dimension_semantics = [#tpu.dimension_semantics<parallel>], iteration_bounds = array<i64: 1>, scalar_prefetch = 0 : i64, scratch_operands = 0 : i64, tpu.core_type = #tpu.core_type<tc>, window_params = [{transform_indices = @transform_0, window_bounds = array<i64: 8, 640>}, {pipeline_mode = #tpu.pipeline_mode<synchronous>, transform_indices = @transform_1, window_bounds = array<i64: 640, 384>}, {pipeline_mode = #tpu.pipeline_mode<synchronous>, transform_indices = @transform_2, window_bounds = array<i64: 1, 384>}, {pipeline_mode = #tpu.pipeline_mode<synchronous>, transform_indices = @transform_3, window_bounds = array<i64: 384, 128>}, {pipeline_mode = #tpu.pipeline_mode<synchronous>, transform_indices = @transform_4, window_bounds = array<i64: 1, 128>}, {pipeline_mode = #tpu.pipeline_mode<synchronous>, transform_indices = @transform_5, window_bounds = array<i64: 128, 128>}, {pipeline_mode = #tpu.pipeline_mode<synchronous>, transform_indices = @transform_6, window_bounds = array<i64: 1, 128>}, {transform_indices = @transform_7, window_bounds = array<i64: 8, 128>}]} {
    %c0 = arith.constant 0 : index
    %c0_0 = arith.constant 0 : index
    %0 = vector.load %arg1[%c0, %c0_0] : memref<8x640xbf16, #tpu.memory_space<vmem>>, vector<8x640xbf16>
    %c0_1 = arith.constant 0 : index
    %c0_2 = arith.constant 0 : index
    %1 = vector.load %arg2[%c0_1, %c0_2] : memref<640x384xbf16, #tpu.memory_space<vmem>>, vector<640x384xbf16>
    %cst = arith.constant dense<0.000000e+00> : vector<8x384xf32>
    %2 = tpu.matmul %0, %1, %cst {dimension_numbers = #tpu.dot_dimension_numbers<[1], [0], [0], [1], [0, 0, 1, 1], [], []>} : vector<8x640xbf16>, vector<640x384xbf16>, vector<8x384xf32> -> vector<8x384xf32>
    %c0_3 = arith.constant 0 : index
    %c0_4 = arith.constant 0 : index
    %3 = vector.load %arg3[%c0_3, %c0_4] : memref<1x384xf32, #tpu.memory_space<vmem>>, vector<1x384xf32>
    %4 = vector.broadcast %3 : vector<1x384xf32> to vector<8x384xf32>
    %5 = arith.addf %2, %4 : vector<8x384xf32>
    %cst_5 = arith.constant 0.000000e+00 : f32
    %6 = vector.broadcast %cst_5 : f32 to vector<8x384xf32>
    %7 = arith.maximumf %5, %6 : vector<8x384xf32>
    %8 = arith.truncf %7 : vector<8x384xf32> to vector<8x384xbf16>
    %c0_6 = arith.constant 0 : index
    %c0_7 = arith.constant 0 : index
    %9 = vector.load %arg4[%c0_6, %c0_7] : memref<384x128xbf16, #tpu.memory_space<vmem>>, vector<384x128xbf16>
    %cst_8 = arith.constant dense<0.000000e+00> : vector<8x128xf32>
    %10 = tpu.matmul %8, %9, %cst_8 {dimension_numbers = #tpu.dot_dimension_numbers<[1], [0], [0], [1], [0, 0, 1, 1], [], []>} : vector<8x384xbf16>, vector<384x128xbf16>, vector<8x128xf32> -> vector<8x128xf32>
    %c0_9 = arith.constant 0 : index
    %c0_10 = arith.constant 0 : index
    %11 = vector.load %arg5[%c0_9, %c0_10] : memref<1x128xf32, #tpu.memory_space<vmem>>, vector<1x128xf32>
    %12 = vector.broadcast %11 : vector<1x128xf32> to vector<8x128xf32>
    %13 = arith.addf %10, %12 : vector<8x128xf32>
    %cst_11 = arith.constant 0.000000e+00 : f32
    %14 = vector.broadcast %cst_11 : f32 to vector<8x128xf32>
    %15 = arith.maximumf %13, %14 : vector<8x128xf32>
    %16 = arith.truncf %15 : vector<8x128xf32> to vector<8x128xbf16>
    %c0_12 = arith.constant 0 : index
    %c0_13 = arith.constant 0 : index
    %17 = vector.load %arg6[%c0_12, %c0_13] : memref<128x128xbf16, #tpu.memory_space<vmem>>, vector<128x128xbf16>
    %cst_14 = arith.constant dense<0.000000e+00> : vector<8x128xf32>
    %18 = tpu.matmul %16, %17, %cst_14 {dimension_numbers = #tpu.dot_dimension_numbers<[1], [0], [0], [1], [0, 0, 1, 1], [], []>} : vector<8x128xbf16>, vector<128x128xbf16>, vector<8x128xf32> -> vector<8x128xf32>
    %c0_15 = arith.constant 0 : index
    %c0_16 = arith.constant 0 : index
    %19 = vector.load %arg7[%c0_15, %c0_16] : memref<1x128xf32, #tpu.memory_space<vmem>>, vector<1x128xf32>
    %20 = vector.broadcast %19 : vector<1x128xf32> to vector<8x128xf32>
    %21 = arith.addf %18, %20 : vector<8x128xf32>
    %cst_17 = arith.constant 0.000000e+00 : f32
    %22 = vector.broadcast %cst_17 : f32 to vector<8x128xf32>
    %23 = arith.maximumf %21, %22 : vector<8x128xf32>
    %c0_18 = arith.constant 0 : index
    %c0_19 = arith.constant 0 : index
    %24 = vector.load %arg8[%c0_18, %c0_19] : memref<8x128xf32, #tpu.memory_space<vmem>>, vector<8x128xf32>
    tpu.vector_store %arg8[%c0_18, %c0_19], %23 {strides = array<i32>} : memref<8x128xf32, #tpu.memory_space<vmem>>, vector<8x128xf32>,
    return
  }
  func.func @transform_0(%arg0: i32) -> (i32, i32) {
    %c0_i32 = arith.constant 0 : i32
    %c0_i32_0 = arith.constant 0 : i32
    return %arg0, %c0_i32 : i32, i32
  }
  func.func @transform_1(%arg0: i32) -> (i32, i32) {
    %c0_i32 = arith.constant 0 : i32
    %c0_i32_0 = arith.constant 0 : i32
    %c0_i32_1 = arith.constant 0 : i32
    return %c0_i32, %c0_i32_0 : i32, i32
  }
  func.func @transform_2(%arg0: i32) -> (i32, i32) {
    %c0_i32 = arith.constant 0 : i32
    %c0_i32_0 = arith.constant 0 : i32
    %c0_i32_1 = arith.constant 0 : i32
    return %c0_i32, %c0_i32_0 : i32, i32
  }
  func.func @transform_3(%arg0: i32) -> (i32, i32) {
    %c0_i32 = arith.constant 0 : i32
    %c0_i32_0 = arith.constant 0 : i32
    %c0_i32_1 = arith.constant 0 : i32
    return %c0_i32, %c0_i32_0 : i32, i32
  }
  func.func @transform_4(%arg0: i32) -> (i32, i32) {
    %c0_i32 = arith.constant 0 : i32
    %c0_i32_0 = arith.constant 0 : i32
    %c0_i32_1 = arith.constant 0 : i32
    return %c0_i32, %c0_i32_0 : i32, i32
  }
  func.func @transform_5(%arg0: i32) -> (i32, i32) {
    %c0_i32 = arith.constant 0 : i32
    %c0_i32_0 = arith.constant 0 : i32
    %c0_i32_1 = arith.constant 0 : i32
    return %c0_i32, %c0_i32_0 : i32, i32
  }
  func.func @transform_6(%arg0: i32) -> (i32, i32) {
    %c0_i32 = arith.constant 0 : i32
    %c0_i32_0 = arith.constant 0 : i32
    %c0_i32_1 = arith.constant 0 : i32
    return %c0_i32, %c0_i32_0 : i32, i32
  }
  func.func @transform_7(%arg0: i32) -> (i32, i32) {
    %c0_i32 = arith.constant 0 : i32
    %c0_i32_0 = arith.constant 0 : i32
    return %arg0, %c0_i32 : i32, i32
  }
}

</mosaic_0001>

<llo_original>
// kernel: net_purchase_forward.1
$region0: #{net_purchase_forward.1}
  #allocation0 [shape = 'u32[]', space=smem, size = 0x4, offset = 0x4, fixed_abs, tag = 'smem constant byte address 0x4 - core index']
  #allocation1 [shape = 'u32[144,128]{1,0:T(1,128)}', space=vmem, size = 0x12000, scoped, tag = 'internal scratch']
  %s0 = inlined_call_operand.vmem [shape: bf16[8,640], index: 0, kind: input, shape index: {}]
  %s1 = inlined_call_operand.hbm [shape: bf16[640,384], index: 1, kind: input, shape index: {}]
  %s2 = inlined_call_operand.vmem [shape: f32[1,384], index: 2, kind: input, shape index: {}]
  %s3 = inlined_call_operand.hbm [shape: bf16[384,128], index: 3, kind: input, shape index: {}]
  %s4 = inlined_call_operand.vmem [shape: f32[1,128], index: 4, kind: input, shape index: {}]
  %s5 = inlined_call_operand.hbm [shape: bf16[128,128], index: 5, kind: input, shape index: {}]
  %s6 = inlined_call_operand.vmem [shape: f32[1,128], index: 6, kind: input, shape index: {}]
  %s7 = inlined_call_operand.vmem [shape: f32[8,128], index: 7, kind: output, shape index: {}]
  %s8 = sld [smem:[#allocation0]]
  $region50: #{net_purchase_forward.1} parent=0
    _
  %s10 = ssub.s32 1, %s8
  %s11 = scalar_select 0, %s10, %s8
  $region1: #{net_purchase_forward.1} parent=0
    #allocation2 [shape = 'u8[491520]{0}', space=vmem, size = 0x78000, scoped, tag = 'input window, operand 1, single buffered']
    #allocation3 [shape = 's32[1]{0}', space=sflag, size = 0x4, scoped, tag = 'scoped memory for net_purchase_forward.1']
    #allocation4 [shape = 'u8[98304]{0}', space=vmem, size = 0x18000, scoped, tag = 'input window, operand 3, single buffered']
    #allocation5 [shape = 's32[1]{0}', space=sflag, size = 0x4, scoped, tag = 'scoped memory for net_purchase_forward.1']
    #allocation6 [shape = 'u8[32768]{0}', space=vmem, size = 0x8000, scoped, tag = 'input window, operand 5, single buffered']
    %12 = vsyncpa [#allocation3], 0
    %13 = vsyncpa [#allocation5], 0
    // Predicated region
    $region2: #{net_purchase_forward.1} parent=1 // pred_check
      _
    $region3: #{net_purchase_forward.1} parent=1 // pred_check_branch
      %15 = sbr.rel (0) target = $region5
    $region4: #{net_purchase_forward.1} parent=1 // pred_region
      _
    $region5: #{net_purchase_forward.1} parent=1 // pred_fallthru
      _
    // Predicated region
    $region6: #{net_purchase_forward.1} parent=1 // pred_check
      _
    $region7: #{net_purchase_forward.1} parent=1 // pred_check_branch
      %17 = sbr.rel (0) target = $region9
    $region8: #{net_purchase_forward.1} parent=1 // pred_region
      %s19 = ssub.s32 15360, 15360
      %20 = vsyncadd [#allocation3], %s19
      %s21 = sshll.u32 [#allocation2], 4
      %s22 = int_to_ptr.vmem [resolvable:$true] %s21
      %27 = dma.hbm_to_vmem [thread:$0]  %s1, 15360, %s22, [#allocation3], 192, 192, 12
    $region9: #{net_purchase_forward.1} parent=1 // pred_fallthru
      _
    // Predicated region
    $region10: #{net_purchase_forward.1} parent=1 // pred_check
      _
    $region11: #{net_purchase_forward.1} parent=1 // pred_check_branch
      %29 = sbr.rel (0) target = $region13
    $region12: #{net_purchase_forward.1} parent=1 // pred_region
      _
    $region13: #{net_purchase_forward.1} parent=1 // pred_fallthru
      _
    // Predicated region
    $region14: #{net_purchase_forward.1} parent=1 // pred_check
      _
    $region15: #{net_purchase_forward.1} parent=1 // pred_check_branch
      %31 = sbr.rel (0) target = $region17
    $region16: #{net_purchase_forward.1} parent=1 // pred_region
      %s33 = ssub.s32 3072, 3072
      %34 = vsyncadd [#allocation5], %s33
      %s35 = sshll.u32 [#allocation4], 4
      %s36 = int_to_ptr.vmem [resolvable:$true] %s35
      %41 = dma.hbm_to_vmem [thread:$0]  %s3, 3072, %s36, [#allocation5], 64, 64, 4
    $region17: #{net_purchase_forward.1} parent=1 // pred_fallthru
      _
    // Predicated region
    $region18: #{net_purchase_forward.1} parent=1 // pred_check
      _
    $region19: #{net_purchase_forward.1} parent=1 // pred_check_branch
      %43 = sbr.rel (0) target = $region21
    $region20: #{net_purchase_forward.1} parent=1 // pred_region
      _
    $region21: #{net_purchase_forward.1} parent=1 // pred_fallthru
      _
    // Predicated region
    $region22: #{net_purchase_forward.1} parent=1 // pred_check
      _
    $region23: #{net_purchase_forward.1} parent=1 // pred_check_branch
      %45 = sbr.rel (0) target = $region25
    $region24: #{net_purchase_forward.1} parent=1 // pred_region
      %s47 = ssub.s32 1024, 1024
      %48 = vsyncadd [#allocation5], %s47
      %s49 = sshll.u32 [#allocation6], 4
      %s50 = int_to_ptr.vmem [resolvable:$true] %s49
      %55 = dma.hbm_to_vmem [thread:$0]  %s5, 1024, %s50, [#allocation5], 64, 64, 4
    $region25: #{net_purchase_forward.1} parent=1 // pred_fallthru
      _
    // Predicated region
    $region26: #{net_purchase_forward.1} parent=1 // pred_check
      _
    $region27: #{net_purchase_forward.1} parent=1 // pred_check_branch
      %57 = sbr.rel (0) target = $region29
    $region28: #{net_purchase_forward.1} parent=1 // pred_region
      _
    $region29: #{net_purchase_forward.1} parent=1 // pred_fallthru
      _
    // Predicated region
    $region30: #{net_purchase_forward.1} parent=1 // pred_check
      _
    $region31: #{net_purchase_forward.1} parent=1 // pred_check_branch
      %59 = sbr.rel (0) target = $region33
    $region32: #{net_purchase_forward.1} parent=1 // pred_region
      %60 = dma.done [#allocation3], 15360
    $region33: #{net_purchase_forward.1} parent=1 // pred_fallthru
      _
    // Predicated region
    $region34: #{net_purchase_forward.1} parent=1 // pred_check
      _
    $region35: #{net_purchase_forward.1} parent=1 // pred_check_branch
      %62 = sbr.rel (0) target = $region37
    $region36: #{net_purchase_forward.1} parent=1 // pred_region
      %63 = dma.done [#allocation5], 3072
    $region37: #{net_purchase_forward.1} parent=1 // pred_fallthru
      _
    // Predicated region
    $region38: #{net_purchase_forward.1} parent=1 // pred_check
      _
    $region39: #{net_purchase_forward.1} parent=1 // pred_check_branch
      %65 = sbr.rel (0) target = $region41
    $region40: #{net_purchase_forward.1} parent=1 // pred_region
      %66 = dma.done [#allocation5], 1024
    $region41: #{net_purchase_forward.1} parent=1 // pred_fallthru
      _
    %v68 = vld [vmem:[%s0] sm:$0xff]
    %v69 = vld [vmem:[%s0 + $0x8] sm:$0xff]
    %v70 = vld [vmem:[%s0 + $0x10] sm:$0xf]
    %v71 = vld [vmem:[#allocation2] sm:$0xff]
    %v72 = vld [vmem:[#allocation2 + $0x8] sm:$0xf]
    %v73 = vld [vmem:[#allocation2 + $0xc] sm:$0xff]
    %v74 = vld [vmem:[#allocation2 + $0x14] sm:$0xf]
    %v75 = vld [vmem:[#allocation2 + $0x18] sm:$0xff]
    %v76 = vld [vmem:[#allocation2 + $0x20] sm:$0xf]
    %v77 = vld [vmem:[#allocation2 + $0x24] sm:$0xff]
    %v78 = vld [vmem:[#allocation2 + $0x2c] sm:$0xf]
    %v79 = vld [vmem:[#allocation2 + $0x30] sm:$0xff]
    %v80 = vld [vmem:[#allocation2 + $0x38] sm:$0xf]
    %v81 = vld [vmem:[#allocation2 + $0x3c] sm:$0xff]
    %v82 = vld [vmem:[#allocation2 + $0x44] sm:$0xf]
    %v83 = vld [vmem:[#allocation2 + $0x48] sm:$0xff]
    %v84 = vld [vmem:[#allocation2 + $0x50] sm:$0xf]
    %v85 = vld [vmem:[#allocation2 + $0x54] sm:$0xff]
    %v86 = vld [vmem:[#allocation2 + $0x5c] sm:$0xf]
    %v87 = vld [vmem:[#allocation2 + $0x60] sm:$0xff]
    %v88 = vld [vmem:[#allocation2 + $0x68] sm:$0xf]
    %v89 = vld [vmem:[#allocation2 + $0x6c] sm:$0xff]
    %v90 = vld [vmem:[#allocation2 + $0x74] sm:$0xf]
    %v91 = vld [vmem:[#allocation2 + $0x78] sm:$0xff]
    %v92 = vld [vmem:[#allocation2 + $0x80] sm:$0xf]
    %v93 = vld [vmem:[#allocation2 + $0x84] sm:$0xff]
    %v94 = vld [vmem:[#allocation2 + $0x8c] sm:$0xf]
    %v95 = vld [vmem:[#allocation2 + $0x90] sm:$0xff]
    %v96 = vld [vmem:[#allocation2 + $0x98] sm:$0xf]
    %v97 = vld [vmem:[#allocation2 + $0x9c] sm:$0xff]
    %v98 = vld [vmem:[#allocation2 + $0xa4] sm:$0xf]
    %v99 = vld [vmem:[#allocation2 + $0xa8] sm:$0xff]
    %v100 = vld [vmem:[#allocation2 + $0xb0] sm:$0xf]
    %v101 = vld [vmem:[#allocation2 + $0xb4] sm:$0xff]
    %v102 = vld [vmem:[#allocation2 + $0xbc] sm:$0xf]
    %v103 = vld [vmem:[#allocation2 + $0xc0] sm:$0xff]
    %v104 = vld [vmem:[#allocation2 + $0xc8] sm:$0xf]
    %v105 = vld [vmem:[#allocation2 + $0xcc] sm:$0xff]
    %v106 = vld [vmem:[#allocation2 + $0xd4] sm:$0xf]
    %v107 = vld [vmem:[#allocation2 + $0xd8] sm:$0xff]
    %v108 = vld [vmem:[#allocation2 + $0xe0] sm:$0xf]
    %v109 = vld [vmem:[#allocation2 + $0xe4] sm:$0xff]
    %v110 = vld [vmem:[#allocation2 + $0xec] sm:$0xf]
    %v111 = vld [vmem:[#allocation2 + $0xf0] sm:$0xff]
    %v112 = vld [vmem:[#allocation2 + $0xf8] sm:$0xf]
    %v113 = vld [vmem:[#allocation2 + $0xfc] sm:$0xff]
    %v114 = vld [vmem:[#allocation2 + $0x104] sm:$0xf]
    %v115 = vld [vmem:[#allocation2 + $0x108] sm:$0xff]
    %v116 = vld [vmem:[#allocation2 + $0x110] sm:$0xf]
    %v117 = vld [vmem:[#allocation2 + $0x114] sm:$0xff]
    %v118 = vld [vmem:[#allocation2 + $0x11c] sm:$0xf]
    %v119 = vld [vmem:[#allocation2 + $0x120] sm:$0xff]
    %v120 = vld [vmem:[#allocation2 + $0x128] sm:$0xf]
    %v121 = vld [vmem:[#allocation2 + $0x12c] sm:$0xff]
    %v122 = vld [vmem:[#allocation2 + $0x134] sm:$0xf]
    %v123 = vld [vmem:[#allocation2 + $0x138] sm:$0xff]
    %v124 = vld [vmem:[#allocation2 + $0x140] sm:$0xf]
    %v125 = vld [vmem:[#allocation2 + $0x144] sm:$0xff]
    %v126 = vld [vmem:[#allocation2 + $0x14c] sm:$0xf]
    %v127 = vld [vmem:[#allocation2 + $0x150] sm:$0xff]
    %v128 = vld [vmem:[#allocation2 + $0x158] sm:$0xf]
    %v129 = vld [vmem:[#allocation2 + $0x15c] sm:$0xff]
    %v130 = vld [vmem:[#allocation2 + $0x164] sm:$0xf]
    %v131 = vld [vmem:[#allocation2 + $0x168] sm:$0xff]
    %v132 = vld [vmem:[#allocation2 + $0x170] sm:$0xf]
    %v133 = vld [vmem:[#allocation2 + $0x174] sm:$0xff]
    %v134 = vld [vmem:[#allocation2 + $0x17c] sm:$0xf]
    %v135 = vld [vmem:[#allocation2 + $0x180] sm:$0xff]
    %v136 = vld [vmem:[#allocation2 + $0x188] sm:$0xf]
    %v137 = vld [vmem:[#allocation2 + $0x18c] sm:$0xff]
    %v138 = vld [vmem:[#allocation2 + $0x194] sm:$0xf]
    %v139 = vld [vmem:[#allocation2 + $0x198] sm:$0xff]
    %v140 = vld [vmem:[#allocation2 + $0x1a0] sm:$0xf]
    %v141 = vld [vmem:[#allocation2 + $0x1a4] sm:$0xff]
    %v142 = vld [vmem:[#allocation2 + $0x1ac] sm:$0xf]
    %v143 = vld [vmem:[#allocation2 + $0x1b0] sm:$0xff]
    %v144 = vld [vmem:[#allocation2 + $0x1b8] sm:$0xf]
    %v145 = vld [vmem:[#allocation2 + $0x1bc] sm:$0xff]
    %v146 = vld [vmem:[#allocation2 + $0x1c4] sm:$0xf]
    %v147 = vld [vmem:[#allocation2 + $0x1c8] sm:$0xff]
    %v148 = vld [vmem:[#allocation2 + $0x1d0] sm:$0xf]
    %v149 = vld [vmem:[#allocation2 + $0x1d4] sm:$0xff]
    %v150 = vld [vmem:[#allocation2 + $0x1dc] sm:$0xf]
    %v151 = vld [vmem:[#allocation2 + $0x1e0] sm:$0xff]
    %v152 = vld [vmem:[#allocation2 + $0x1e8] sm:$0xf]
    %v153 = vld [vmem:[#allocation2 + $0x1ec] sm:$0xff]
    %v154 = vld [vmem:[#allocation2 + $0x1f4] sm:$0xf]
    %v155 = vld [vmem:[#allocation2 + $0x1f8] sm:$0xff]
    %v156 = vld [vmem:[#allocation2 + $0x200] sm:$0xf]
    %v157 = vld [vmem:[#allocation2 + $0x204] sm:$0xff]
    %v158 = vld [vmem:[#allocation2 + $0x20c] sm:$0xf]
    %v159 = vld [vmem:[#allocation2 + $0x210] sm:$0xff]
    %v160 = vld [vmem:[#allocation2 + $0x218] sm:$0xf]
    %v161 = vld [vmem:[#allocation2 + $0x21c] sm:$0xff]
    %v162 = vld [vmem:[#allocation2 + $0x224] sm:$0xf]
    %v163 = vld [vmem:[#allocation2 + $0x228] sm:$0xff]
    %v164 = vld [vmem:[#allocation2 + $0x230] sm:$0xf]
    %v165 = vld [vmem:[#allocation2 + $0x234] sm:$0xff]
    %v166 = vld [vmem:[#allocation2 + $0x23c] sm:$0xf]
    %v167 = vld [vmem:[#allocation2 + $0x240] sm:$0xff]
    %v168 = vld [vmem:[#allocation2 + $0x248] sm:$0xf]
    %v169 = vld [vmem:[#allocation2 + $0x24c] sm:$0xff]
    %v170 = vld [vmem:[#allocation2 + $0x254] sm:$0xf]
    %v171 = vld [vmem:[#allocation2 + $0x258] sm:$0xff]
    %v172 = vld [vmem:[#allocation2 + $0x260] sm:$0xf]
    %v173 = vld [vmem:[#allocation2 + $0x264] sm:$0xff]
    %v174 = vld [vmem:[#allocation2 + $0x26c] sm:$0xf]
    %v175 = vld [vmem:[#allocation2 + $0x270] sm:$0xff]
    %v176 = vld [vmem:[#allocation2 + $0x278] sm:$0xf]
    %v177 = vld [vmem:[#allocation2 + $0x27c] sm:$0xff]
    %v178 = vld [vmem:[#allocation2 + $0x284] sm:$0xf]
    %v179 = vld [vmem:[#allocation2 + $0x288] sm:$0xff]
    %v180 = vld [vmem:[#allocation2 + $0x290] sm:$0xf]
    %v181 = vld [vmem:[#allocation2 + $0x294] sm:$0xff]
    %v182 = vld [vmem:[#allocation2 + $0x29c] sm:$0xf]
    %v183 = vld [vmem:[#allocation2 + $0x2a0] sm:$0xff]
    %v184 = vld [vmem:[#allocation2 + $0x2a8] sm:$0xf]
    %v185 = vld [vmem:[#allocation2 + $0x2ac] sm:$0xff]
    %v186 = vld [vmem:[#allocation2 + $0x2b4] sm:$0xf]
    %v187 = vld [vmem:[#allocation2 + $0x2b8] sm:$0xff]
    %v188 = vld [vmem:[#allocation2 + $0x2c0] sm:$0xf]
    %v189 = vld [vmem:[#allocation2 + $0x2c4] sm:$0xff]
    %v190 = vld [vmem:[#allocation2 + $0x2cc] sm:$0xf]
    %v191 = vld [vmem:[#allocation2 + $0x2d0] sm:$0xff]
    %v192 = vld [vmem:[#allocation2 + $0x2d8] sm:$0xf]
    %v193 = vld [vmem:[#allocation2 + $0x2dc] sm:$0xff]
    %v194 = vld [vmem:[#allocation2 + $0x2e4] sm:$0xf]
    %v195 = vld [vmem:[#allocation2 + $0x2e8] sm:$0xff]
    %v196 = vld [vmem:[#allocation2 + $0x2f0] sm:$0xf]
    %v197 = vld [vmem:[#allocation2 + $0x2f4] sm:$0xff]
    %v198 = vld [vmem:[#allocation2 + $0x2fc] sm:$0xf]
    %v199 = vld [vmem:[#allocation2 + $0x300] sm:$0xff]
    %v200 = vld [vmem:[#allocation2 + $0x308] sm:$0xf]
    %v201 = vld [vmem:[#allocation2 + $0x30c] sm:$0xff]
    %v202 = vld [vmem:[#allocation2 + $0x314] sm:$0xf]
    %v203 = vld [vmem:[#allocation2 + $0x318] sm:$0xff]
    %v204 = vld [vmem:[#allocation2 + $0x320] sm:$0xf]
    %v205 = vld [vmem:[#allocation2 + $0x324] sm:$0xff]
    %v206 = vld [vmem:[#allocation2 + $0x32c] sm:$0xf]
    %v207 = vld [vmem:[#allocation2 + $0x330] sm:$0xff]
    %v208 = vld [vmem:[#allocation2 + $0x338] sm:$0xf]
    %v209 = vld [vmem:[#allocation2 + $0x33c] sm:$0xff]
    %v210 = vld [vmem:[#allocation2 + $0x344] sm:$0xf]
    %v211 = vld [vmem:[#allocation2 + $0x348] sm:$0xff]
    %v212 = vld [vmem:[#allocation2 + $0x350] sm:$0xf]
    %v213 = vld [vmem:[#allocation2 + $0x354] sm:$0xff]
    %v214 = vld [vmem:[#allocation2 + $0x35c] sm:$0xf]
    %v215 = vld [vmem:[#allocation2 + $0x360] sm:$0xff]
    %v216 = vld [vmem:[#allocation2 + $0x368] sm:$0xf]
    %v217 = vld [vmem:[#allocation2 + $0x36c] sm:$0xff]
    %v218 = vld [vmem:[#allocation2 + $0x374] sm:$0xf]
    %v219 = vld [vmem:[#allocation2 + $0x378] sm:$0xff]
    %v220 = vld [vmem:[#allocation2 + $0x380] sm:$0xf]
    %v221 = vld [vmem:[#allocation2 + $0x384] sm:$0xff]
    %v222 = vld [vmem:[#allocation2 + $0x38c] sm:$0xf]
    %v223 = vld [vmem:[#allocation2 + $0x390] sm:$0xff]
    %v224 = vld [vmem:[#allocation2 + $0x398] sm:$0xf]
    %v225 = vld [vmem:[#allocation2 + $0x39c] sm:$0xff]
    %v226 = vld [vmem:[#allocation2 + $0x3a4] sm:$0xf]
    %v227 = vld [vmem:[#allocation2 + $0x3a8] sm:$0xff]
    %v228 = vld [vmem:[#allocation2 + $0x3b0] sm:$0xf]
    %v229 = vld [vmem:[#allocation2 + $0x3b4] sm:$0xff]
    %v230 = vld [vmem:[#allocation2 + $0x3bc] sm:$0xf]
    %v231 = vld [vmem:[%s2] sm:$0x7]
    %v233 = vlaneseq
    %v234 = vshrl.u32 %v233, 7
    %v235 = vsub.s32 0, %v234
    %v236 = vrot.slane %v231, %v235
    %v237 = vlaneseq
    %v238 = vshrl.u32 %v237, 7
    %v239 = vsub.s32 1, %v238
    %v240 = vrot.slane %v231, %v239
    %v241 = vlaneseq
    %v242 = vshrl.u32 %v241, 7
    %v243 = vsub.s32 2, %v242
    %v244 = vrot.slane %v231, %v243
    %v251 = vunpack.c.l.b16 %v68
    %v252 = vunpack.c.h.b16 %v68
    %v253 = vunpack.c.l.b16 %v69
    %v254 = vunpack.c.h.b16 %v69
    %v255 = vunpack.c.l.b16 %v70
    %v256 = vpack.c.b16 %v251, %v251
    %v257 = vpack.c.b16 %v252, %v252
    %v258 = vpack.c.b16 %v253, %v253
    %v259 = vpack.c.b16 %v254, %v254
    %v260 = vpack.c.b16 %v255, %v255
    %v426 = vunpack.c.l.b16 %v71
    %v427 = vunpack.c.h.b16 %v71
    %v428 = vunpack.c.l.b16 %v72
    %v429 = vunpack.c.l.b16 %v73
    %v430 = vunpack.c.h.b16 %v73
    %v431 = vunpack.c.l.b16 %v74
    %v432 = vunpack.c.l.b16 %v75
    %v433 = vunpack.c.h.b16 %v75
    %v434 = vunpack.c.l.b16 %v76
    %v435 = vunpack.c.l.b16 %v77
    %v436 = vunpack.c.h.b16 %v77
    %v437 = vunpack.c.l.b16 %v78
    %v438 = vunpack.c.l.b16 %v79
    %v439 = vunpack.c.h.b16 %v79
    %v440 = vunpack.c.l.b16 %v80
    %v441 = vunpack.c.l.b16 %v81
    %v442 = vunpack.c.h.b16 %v81
    %v443 = vunpack.c.l.b16 %v82
    %v444 = vunpack.c.l.b16 %v83
    %v445 = vunpack.c.h.b16 %v83
    %v446 = vunpack.c.l.b16 %v84
    %v447 = vunpack.c.l.b16 %v85
    %v448 = vunpack.c.h.b16 %v85
    %v449 = vunpack.c.l.b16 %v86
    %v450 = vunpack.c.l.b16 %v87
    %v451 = vunpack.c.h.b16 %v87
    %v452 = vunpack.c.l.b16 %v88
    %v453 = vunpack.c.l.b16 %v89
    %v454 = vunpack.c.h.b16 %v89
    %v455 = vunpack.c.l.b16 %v90
    %v456 = vunpack.c.l.b16 %v91
    %v457 = vunpack.c.h.b16 %v91
    %v458 = vunpack.c.l.b16 %v92
    %v459 = vunpack.c.l.b16 %v93
    %v460 = vunpack.c.h.b16 %v93
    %v461 = vunpack.c.l.b16 %v94
    %v462 = vunpack.c.l.b16 %v95
    %v463 = vunpack.c.h.b16 %v95
    %v464 = vunpack.c.l.b16 %v96
    %v465 = vunpack.c.l.b16 %v97
    %v466 = vunpack.c.h.b16 %v97
    %v467 = vunpack.c.l.b16 %v98
    %v468 = vunpack.c.l.b16 %v99
    %v469 = vunpack.c.h.b16 %v99
    %v470 = vunpack.c.l.b16 %v100
    %v471 = vunpack.c.l.b16 %v101
    %v472 = vunpack.c.h.b16 %v101
    %v473 = vunpack.c.l.b16 %v102
    %v474 = vunpack.c.l.b16 %v103
    %v475 = vunpack.c.h.b16 %v103
    %v476 = vunpack.c.l.b16 %v104
    %v477 = vunpack.c.l.b16 %v105
    %v478 = vunpack.c.h.b16 %v105
    %v479 = vunpack.c.l.b16 %v106
    %v480 = vunpack.c.l.b16 %v107
    %v481 = vunpack.c.h.b16 %v107
    %v482 = vunpack.c.l.b16 %v108
    %v483 = vunpack.c.l.b16 %v109
    %v484 = vunpack.c.h.b16 %v109
    %v485 = vunpack.c.l.b16 %v110
    %v486 = vunpack.c.l.b16 %v111
    %v487 = vunpack.c.h.b16 %v111
    %v488 = vunpack.c.l.b16 %v112
    %v489 = vunpack.c.l.b16 %v113
    %v490 = vunpack.c.h.b16 %v113
    %v491 = vunpack.c.l.b16 %v114
    %v492 = vunpack.c.l.b16 %v115
    %v493 = vunpack.c.h.b16 %v115
    %v494 = vunpack.c.l.b16 %v116
    %v495 = vunpack.c.l.b16 %v117
    %v496 = vunpack.c.h.b16 %v117
    %v497 = vunpack.c.l.b16 %v118
    %v498 = vunpack.c.l.b16 %v119
    %v499 = vunpack.c.h.b16 %v119
    %v500 = vunpack.c.l.b16 %v120
    %v501 = vunpack.c.l.b16 %v121
    %v502 = vunpack.c.h.b16 %v121
    %v503 = vunpack.c.l.b16 %v122
    %v504 = vunpack.c.l.b16 %v123
    %v505 = vunpack.c.h.b16 %v123
    %v506 = vunpack.c.l.b16 %v124
    %v507 = vunpack.c.l.b16 %v125
    %v508 = vunpack.c.h.b16 %v125
    %v509 = vunpack.c.l.b16 %v126
    %v510 = vunpack.c.l.b16 %v127
    %v511 = vunpack.c.h.b16 %v127
    %v512 = vunpack.c.l.b16 %v128
    %v513 = vunpack.c.l.b16 %v129
    %v514 = vunpack.c.h.b16 %v129
    %v515 = vunpack.c.l.b16 %v130
    %v516 = vunpack.c.l.b16 %v131
    %v517 = vunpack.c.h.b16 %v131
    %v518 = vunpack.c.l.b16 %v132
    %v519 = vunpack.c.l.b16 %v133
    %v520 = vunpack.c.h.b16 %v133
    %v521 = vunpack.c.l.b16 %v134
    %v522 = vunpack.c.l.b16 %v135
    %v523 = vunpack.c.h.b16 %v135
    %v524 = vunpack.c.l.b16 %v136
    %v525 = vunpack.c.l.b16 %v137
    %v526 = vunpack.c.h.b16 %v137
    %v527 = vunpack.c.l.b16 %v138
    %v528 = vunpack.c.l.b16 %v139
    %v529 = vunpack.c.h.b16 %v139
    %v530 = vunpack.c.l.b16 %v140
    %v531 = vunpack.c.l.b16 %v141
    %v532 = vunpack.c.h.b16 %v141
    %v533 = vunpack.c.l.b16 %v142
    %v534 = vunpack.c.l.b16 %v143
    %v535 = vunpack.c.h.b16 %v143
    %v536 = vunpack.c.l.b16 %v144
    %v537 = vunpack.c.l.b16 %v145
    %v538 = vunpack.c.h.b16 %v145
    %v539 = vunpack.c.l.b16 %v146
    %v540 = vunpack.c.l.b16 %v147
    %v541 = vunpack.c.h.b16 %v147
    %v542 = vunpack.c.l.b16 %v148
    %v543 = vunpack.c.l.b16 %v149
    %v544 = vunpack.c.h.b16 %v149
    %v545 = vunpack.c.l.b16 %v150
    %v546 = vunpack.c.l.b16 %v151
    %v547 = vunpack.c.h.b16 %v151
    %v548 = vunpack.c.l.b16 %v152
    %v549 = vunpack.c.l.b16 %v153
    %v550 = vunpack.c.h.b16 %v153
    %v551 = vunpack.c.l.b16 %v154
    %v552 = vunpack.c.l.b16 %v155
    %v553 = vunpack.c.h.b16 %v155
    %v554 = vunpack.c.l.b16 %v156
    %v555 = vunpack.c.l.b16 %v157
    %v556 = vunpack.c.h.b16 %v157
    %v557 = vunpack.c.l.b16 %v158
    %v558 = vunpack.c.l.b16 %v159
    %v559 = vunpack.c.h.b16 %v159
    %v560 = vunpack.c.l.b16 %v160
    %v561 = vunpack.c.l.b16 %v161
    %v562 = vunpack.c.h.b16 %v161
    %v563 = vunpack.c.l.b16 %v162
    %v564 = vunpack.c.l.b16 %v163
    %v565 = vunpack.c.h.b16 %v163
    %v566 = vunpack.c.l.b16 %v164
    %v567 = vunpack.c.l.b16 %v165
    %v568 = vunpack.c.h.b16 %v165
    %v569 = vunpack.c.l.b16 %v166
    %v570 = vunpack.c.l.b16 %v167
    %v571 = vunpack.c.h.b16 %v167
    %v572 = vunpack.c.l.b16 %v168
    %v573 = vunpack.c.l.b16 %v169
    %v574 = vunpack.c.h.b16 %v169
    %v575 = vunpack.c.l.b16 %v170
    %v576 = vunpack.c.l.b16 %v171
    %v577 = vunpack.c.h.b16 %v171
    %v578 = vunpack.c.l.b16 %v172
    %v579 = vunpack.c.l.b16 %v173
    %v580 = vunpack.c.h.b16 %v173
    %v581 = vunpack.c.l.b16 %v174
    %v582 = vunpack.c.l.b16 %v175
    %v583 = vunpack.c.h.b16 %v175
    %v584 = vunpack.c.l.b16 %v176
    %v585 = vunpack.c.l.b16 %v177
    %v586 = vunpack.c.h.b16 %v177
    %v587 = vunpack.c.l.b16 %v178
    %v588 = vunpack.c.l.b16 %v179
    %v589 = vunpack.c.h.b16 %v179
    %v590 = vunpack.c.l.b16 %v180
    %v591 = vunpack.c.l.b16 %v181
    %v592 = vunpack.c.h.b16 %v181
    %v593 = vunpack.c.l.b16 %v182
    %v594 = vunpack.c.l.b16 %v183
    %v595 = vunpack.c.h.b16 %v183
    %v596 = vunpack.c.l.b16 %v184
    %v597 = vunpack.c.l.b16 %v185
    %v598 = vunpack.c.h.b16 %v185
    %v599 = vunpack.c.l.b16 %v186
    %v600 = vunpack.c.l.b16 %v187
    %v601 = vunpack.c.h.b16 %v187
    %v602 = vunpack.c.l.b16 %v188
    %v603 = vunpack.c.l.b16 %v189
    %v604 = vunpack.c.h.b16 %v189
    %v605 = vunpack.c.l.b16 %v190
    %v606 = vunpack.c.l.b16 %v191
    %v607 = vunpack.c.h.b16 %v191
    %v608 = vunpack.c.l.b16 %v192
    %v609 = vunpack.c.l.b16 %v193
    %v610 = vunpack.c.h.b16 %v193
    %v611 = vunpack.c.l.b16 %v194
    %v612 = vunpack.c.l.b16 %v195
    %v613 = vunpack.c.h.b16 %v195
    %v614 = vunpack.c.l.b16 %v196
    %v615 = vunpack.c.l.b16 %v197
    %v616 = vunpack.c.h.b16 %v197
    %v617 = vunpack.c.l.b16 %v198
    %v618 = vunpack.c.l.b16 %v199
    %v619 = vunpack.c.h.b16 %v199
    %v620 = vunpack.c.l.b16 %v200
    %v621 = vunpack.c.l.b16 %v201
    %v622 = vunpack.c.h.b16 %v201
    %v623 = vunpack.c.l.b16 %v202
    %v624 = vunpack.c.l.b16 %v203
    %v625 = vunpack.c.h.b16 %v203
    %v626 = vunpack.c.l.b16 %v204
    %v627 = vunpack.c.l.b16 %v205
    %v628 = vunpack.c.h.b16 %v205
    %v629 = vunpack.c.l.b16 %v206
    %v630 = vunpack.c.l.b16 %v207
    %v631 = vunpack.c.h.b16 %v207
    %v632 = vunpack.c.l.b16 %v208
    %v633 = vunpack.c.l.b16 %v209
    %v634 = vunpack.c.h.b16 %v209
    %v635 = vunpack.c.l.b16 %v210
    %v636 = vunpack.c.l.b16 %v211
    %v637 = vunpack.c.h.b16 %v211
    %v638 = vunpack.c.l.b16 %v212
    %v639 = vunpack.c.l.b16 %v213
    %v640 = vunpack.c.h.b16 %v213
    %v641 = vunpack.c.l.b16 %v214
    %v642 = vunpack.c.l.b16 %v215
    %v643 = vunpack.c.h.b16 %v215
    %v644 = vunpack.c.l.b16 %v216
    %v645 = vunpack.c.l.b16 %v217
    %v646 = vunpack.c.h.b16 %v217
    %v647 = vunpack.c.l.b16 %v218
    %v648 = vunpack.c.l.b16 %v219
    %v649 = vunpack.c.h.b16 %v219
    %v650 = vunpack.c.l.b16 %v220
    %v651 = vunpack.c.l.b16 %v221
    %v652 = vunpack.c.h.b16 %v221
    %v653 = vunpack.c.l.b16 %v222
    %v654 = vunpack.c.l.b16 %v223
    %v655 = vunpack.c.h.b16 %v223
    %v656 = vunpack.c.l.b16 %v224
    %v657 = vunpack.c.l.b16 %v225
    %v658 = vunpack.c.h.b16 %v225
    %v659 = vunpack.c.l.b16 %v226
    %v660 = vunpack.c.l.b16 %v227
    %v661 = vunpack.c.h.b16 %v227
    %v662 = vunpack.c.l.b16 %v228
    %v663 = vunpack.c.l.b16 %v229
    %v664 = vunpack.c.h.b16 %v229
    %v665 = vunpack.c.l.b16 %v230
    %v666 = vpack.c.b16 %v429, %v426
    %v667 = vpack.c.b16 %v430, %v427
    %v668 = vpack.c.b16 %v431, %v428
    %v669 = vpack.c.b16 %v435, %v432
    %v670 = vpack.c.b16 %v436, %v433
    %v671 = vpack.c.b16 %v437, %v434
    %v672 = vpack.c.b16 %v441, %v438
    %v673 = vpack.c.b16 %v442, %v439
    %v674 = vpack.c.b16 %v443, %v440
    %v675 = vpack.c.b16 %v447, %v444
    %v676 = vpack.c.b16 %v448, %v445
    %v677 = vpack.c.b16 %v449, %v446
    %v678 = vpack.c.b16 %v453, %v450
    %v679 = vpack.c.b16 %v454, %v451
    %v680 = vpack.c.b16 %v455, %v452
    %v681 = vpack.c.b16 %v459, %v456
    %v682 = vpack.c.b16 %v460, %v457
    %v683 = vpack.c.b16 %v461, %v458
    %v684 = vpack.c.b16 %v465, %v462
    %v685 = vpack.c.b16 %v466, %v463
    %v686 = vpack.c.b16 %v467, %v464
    %v687 = vpack.c.b16 %v471, %v468
    %v688 = vpack.c.b16 %v472, %v469
    %v689 = vpack.c.b16 %v473, %v470
    %v690 = vpack.c.b16 %v477, %v474
    %v691 = vpack.c.b16 %v478, %v475
    %v692 = vpack.c.b16 %v479, %v476
    %v693 = vpack.c.b16 %v483, %v480
    %v694 = vpack.c.b16 %v484, %v481
    %v695 = vpack.c.b16 %v485, %v482
    %v696 = vpack.c.b16 %v489, %v486
    %v697 = vpack.c.b16 %v490, %v487
    %v698 = vpack.c.b16 %v491, %v488
    %v699 = vpack.c.b16 %v495, %v492
    %v700 = vpack.c.b16 %v496, %v493
    %v701 = vpack.c.b16 %v497, %v494
    %v702 = vpack.c.b16 %v501, %v498
    %v703 = vpack.c.b16 %v502, %v499
    %v704 = vpack.c.b16 %v503, %v500
    %v705 = vpack.c.b16 %v507, %v504
    %v706 = vpack.c.b16 %v508, %v505
    %v707 = vpack.c.b16 %v509, %v506
    %v708 = vpack.c.b16 %v513, %v510
    %v709 = vpack.c.b16 %v514, %v511
    %v710 = vpack.c.b16 %v515, %v512
    %v711 = vpack.c.b16 %v519, %v516
    %v712 = vpack.c.b16 %v520, %v517
    %v713 = vpack.c.b16 %v521, %v518
    %v714 = vpack.c.b16 %v525, %v522
    %v715 = vpack.c.b16 %v526, %v523
    %v716 = vpack.c.b16 %v527, %v524
    %v717 = vpack.c.b16 %v531, %v528
    %v718 = vpack.c.b16 %v532, %v529
    %v719 = vpack.c.b16 %v533, %v530
    %v720 = vpack.c.b16 %v537, %v534
    %v721 = vpack.c.b16 %v538, %v535
    %v722 = vpack.c.b16 %v539, %v536
    %v723 = vpack.c.b16 %v543, %v540
    %v724 = vpack.c.b16 %v544, %v541
    %v725 = vpack.c.b16 %v545, %v542
    %v726 = vpack.c.b16 %v549, %v546
    %v727 = vpack.c.b16 %v550, %v547
    %v728 = vpack.c.b16 %v551, %v548
    %v729 = vpack.c.b16 %v555, %v552
    %v730 = vpack.c.b16 %v556, %v553
    %v731 = vpack.c.b16 %v557, %v554
    %v732 = vpack.c.b16 %v561, %v558
    %v733 = vpack.c.b16 %v562, %v559
    %v734 = vpack.c.b16 %v563, %v560
    %v735 = vpack.c.b16 %v567, %v564
    %v736 = vpack.c.b16 %v568, %v565
    %v737 = vpack.c.b16 %v569, %v566
    %v738 = vpack.c.b16 %v573, %v570
    %v739 = vpack.c.b16 %v574, %v571
    %v740 = vpack.c.b16 %v575, %v572
    %v741 = vpack.c.b16 %v579, %v576
    %v742 = vpack.c.b16 %v580, %v577
    %v743 = vpack.c.b16 %v581, %v578
    %v744 = vpack.c.b16 %v585, %v582
    %v745 = vpack.c.b16 %v586, %v583
    %v746 = vpack.c.b16 %v587, %v584
    %v747 = vpack.c.b16 %v591, %v588
    %v748 = vpack.c.b16 %v592, %v589
    %v749 = vpack.c.b16 %v593, %v590
    %v750 = vpack.c.b16 %v597, %v594
    %v751 = vpack.c.b16 %v598, %v595
    %v752 = vpack.c.b16 %v599, %v596
    %v753 = vpack.c.b16 %v603, %v600
    %v754 = vpack.c.b16 %v604, %v601
    %v755 = vpack.c.b16 %v605, %v602
    %v756 = vpack.c.b16 %v609, %v606
    %v757 = vpack.c.b16 %v610, %v607
    %v758 = vpack.c.b16 %v611, %v608
    %v759 = vpack.c.b16 %v615, %v612
    %v760 = vpack.c.b16 %v616, %v613
    %v761 = vpack.c.b16 %v617, %v614
    %v762 = vpack.c.b16 %v621, %v618
    %v763 = vpack.c.b16 %v622, %v619
    %v764 = vpack.c.b16 %v623, %v620
    %v765 = vpack.c.b16 %v627, %v624
    %v766 = vpack.c.b16 %v628, %v625
    %v767 = vpack.c.b16 %v629, %v626
    %v768 = vpack.c.b16 %v633, %v630
    %v769 = vpack.c.b16 %v634, %v631
    %v770 = vpack.c.b16 %v635, %v632
    %v771 = vpack.c.b16 %v639, %v636
    %v772 = vpack.c.b16 %v640, %v637
    %v773 = vpack.c.b16 %v641, %v638
    %v774 = vpack.c.b16 %v645, %v642
    %v775 = vpack.c.b16 %v646, %v643
    %v776 = vpack.c.b16 %v647, %v644
    %v777 = vpack.c.b16 %v651, %v648
    %v778 = vpack.c.b16 %v652, %v649
    %v779 = vpack.c.b16 %v653, %v650
    %v780 = vpack.c.b16 %v657, %v654
    %v781 = vpack.c.b16 %v658, %v655
    %v782 = vpack.c.b16 %v659, %v656
    %v783 = vpack.c.b16 %v663, %v660
    %v784 = vpack.c.b16 %v664, %v661
    %v785 = vpack.c.b16 %v665, %v662
    %906 = vmatprep.subr.bf16.mxu0 %v667
    %907 = vmatpush1.bf16.msra.mxu0 %v666
    %908 = vmatprep.subr.bf16.mxu0 %v670
    %909 = vmatpush1.bf16.msra.mxu0 %v669
    %910 = vmatprep.subr.bf16.mxu0 %v673
    %911 = vmatpush1.bf16.msra.mxu0 %v672
    %912 = vmatprep.subr.bf16.mxu0 %v676
    %913 = vmatpush1.bf16.msra.mxu0 %v675
    %914 = vmatprep.subr.bf16.mxu0 %v679
    %915 = vmatpush1.bf16.msra.mxu0 %v678
    %916 = vmatprep.subr.bf16.mxu0 %v682
    %917 = vmatpush1.bf16.msra.mxu0 %v681
    %918 = vmatprep.subr.bf16.mxu0 %v685
    %919 = vmatpush1.bf16.msra.mxu0 %v684
    %920 = vmatprep.subr.bf16.mxu0 %v688
    %921 = vmatpush1.bf16.msra.mxu0 %v687
    %922 = vmatprep.subr.bf16.mxu0 %v691
    %923 = vmatpush1.bf16.msra.mxu0 %v690
    %924 = vmatprep.subr.bf16.mxu0 %v694
    %925 = vmatpush1.bf16.msra.mxu0 %v693
    %926 = vmatprep.subr.bf16.mxu0 %v697
    %927 = vmatpush1.bf16.msra.mxu0 %v696
    %928 = vmatprep.subr.bf16.mxu0 %v700
    %929 = vmatpush1.bf16.msra.mxu0 %v699
    %930 = vmatprep.subr.bf16.mxu0 %v703
    %931 = vmatpush1.bf16.msra.mxu0 %v702
    %932 = vmatprep.subr.bf16.mxu0 %v706
    %933 = vmatpush1.bf16.msra.mxu0 %v705
    %934 = vmatprep.subr.bf16.mxu0 %v709
    %935 = vmatpush1.bf16.msra.mxu0 %v708
    %936 = vmatprep.subr.bf16.mxu0 %v712
    %937 = vmatpush1.bf16.msra.mxu0 %v711
    %938 = vmatprep.mubr.bf16.mxu0 %v257
    %939 = vmatmul.mubr.bf16.gmra.mrb[0].mxu0 %v256
    %v940 = vpop.f32.mrb[0].mxu0
    %v941 = vadd.f32 %v236, %v940
    %v942 = vpop.f32.mrb[0].mxu0
    %v943 = vadd.f32 %v240, %v942
    %v944 = vpop.f32.mrb[0].mxu0
    %v945 = vpop.f32.mrb[0].mxu0
    %946 = vdwg.mxu0
    %947 = vmatprep.subr.bf16.mxu0 %v715
    %948 = vmatpush1.bf16.msra.mxu0 %v714
    %949 = vmatprep.subr.bf16.mxu0 %v718
    %950 = vmatpush1.bf16.msra.mxu0 %v717
    %951 = vmatprep.subr.bf16.mxu0 %v721
    %952 = vmatpush1.bf16.msra.mxu0 %v720
    %953 = vmatprep.subr.bf16.mxu0 %v724
    %954 = vmatpush1.bf16.msra.mxu0 %v723
    %955 = vmatprep.subr.bf16.mxu0 %v727
    %956 = vmatpush1.bf16.msra.mxu0 %v726
    %957 = vmatprep.subr.bf16.mxu0 %v730
    %958 = vmatpush1.bf16.msra.mxu0 %v729
    %959 = vmatprep.subr.bf16.mxu0 %v733
    %960 = vmatpush1.bf16.msra.mxu0 %v732
    %961 = vmatprep.subr.bf16.mxu0 %v736
    %962 = vmatpush1.bf16.msra.mxu0 %v735
    %963 = vmatprep.subr.bf16.mxu0 %v739
    %964 = vmatpush1.bf16.msra.mxu0 %v738
    %965 = vmatprep.subr.bf16.mxu0 %v742
    %966 = vmatpush1.bf16.msra.mxu0 %v741
    %967 = vmatprep.subr.bf16.mxu0 %v745
    %968 = vmatpush1.bf16.msra.mxu0 %v744
    %969 = vmatprep.subr.bf16.mxu0 %v748
    %970 = vmatpush1.bf16.msra.mxu0 %v747
    %971 = vmatprep.subr.bf16.mxu0 %v751
    %972 = vmatpush1.bf16.msra.mxu0 %v750
    %973 = vmatprep.subr.bf16.mxu0 %v754
    %974 = vmatpush1.bf16.msra.mxu0 %v753
    %975 = vmatprep.subr.bf16.mxu0 %v757
    %976 = vmatpush1.bf16.msra.mxu0 %v756
    %977 = vmatprep.subr.bf16.mxu0 %v760
    %978 = vmatpush1.bf16.msra.mxu0 %v759
    %979 = vmatprep.mubr.bf16.mxu0 %v259
    %980 = vmatmul.mubr.bf16.gmra.mrb[0].mxu0 %v258
    %v981 = vpop.f32.mrb[0].mxu0
    %v982 = vadd.f32 %v941, %v981
    %v983 = vpop.f32.mrb[0].mxu0
    %v984 = vadd.f32 %v943, %v983
    %v985 = vpop.f32.mrb[0].mxu0
    %v986 = vpop.f32.mrb[0].mxu0
    %987 = vdwg.mxu0
    %988 = vmatprep.subr.bf16.mxu0 %v763
    %989 = vmatpush1.bf16.msra.mxu0 %v762
    %990 = vmatprep.subr.bf16.mxu0 %v766
    %991 = vmatpush1.bf16.msra.mxu0 %v765
    %992 = vmatprep.subr.bf16.mxu0 %v769
    %993 = vmatpush1.bf16.msra.mxu0 %v768
    %994 = vmatprep.subr.bf16.mxu0 %v772
    %995 = vmatpush1.bf16.msra.mxu0 %v771
    %996 = vmatprep.subr.bf16.mxu0 %v775
    %997 = vmatpush1.bf16.msra.mxu0 %v774
    %998 = vmatprep.subr.bf16.mxu0 %v778
    %999 = vmatpush1.bf16.msra.mxu0 %v777
    %1000 = vmatprep.subr.bf16.mxu0 %v781
    %1001 = vmatpush1.bf16.msra.mxu0 %v780
    %1002 = vmatprep.subr.bf16.mxu0 %v784
    %1003 = vmatpush1.bf16.msra.mxu0 %v783
    %1004 = vmatprep.subr.bf16.mxu0 0
    %1005 = vmatpush1.bf16.msra.mxu0 0
    %1006 = vmatprep.subr.bf16.mxu0 0
    %1007 = vmatpush1.bf16.msra.mxu0 0
    %1008 = vmatprep.subr.bf16.mxu0 0
    %1009 = vmatpush1.bf16.msra.mxu0 0
    %1010 = vmatprep.subr.bf16.mxu0 0
    %1011 = vmatpush1.bf16.msra.mxu0 0
    %1012 = vmatprep.subr.bf16.mxu0 0
    %1013 = vmatpush1.bf16.msra.mxu0 0
    %1014 = vmatprep.subr.bf16.mxu0 0
    %1015 = vmatpush1.bf16.msra.mxu0 0
    %1016 = vmatprep.subr.bf16.mxu0 0
    %1017 = vmatpush1.bf16.msra.mxu0 0
    %1018 = vmatprep.subr.bf16.mxu0 0
    %1019 = vmatpush1.bf16.msra.mxu0 0
    %1020 = vmatprep.mubr.bf16.mxu0 0
    %1021 = vmatmul.mubr.bf16.gmra.mrb[0].mxu0 %v260
    %v1022 = vpop.f32.mrb[0].mxu0
    %v1023 = vadd.f32 %v982, %v1022
    %v1024 = vpop.f32.mrb[0].mxu0
    %v1025 = vadd.f32 %v984, %v1024
    %v1026 = vpop.f32.mrb[0].mxu0
    %v1027 = vpop.f32.mrb[0].mxu0
    %1028 = vdwg.mxu0
    %1029 = vmatprep.subr.bf16.mxu0 0
    %1030 = vmatpush1.bf16.msra.mxu0 %v668
    %1031 = vmatprep.subr.bf16.mxu0 0
    %1032 = vmatpush1.bf16.msra.mxu0 %v671
    %1033 = vmatprep.subr.bf16.mxu0 0
    %1034 = vmatpush1.bf16.msra.mxu0 %v674
    %1035 = vmatprep.subr.bf16.mxu0 0
    %1036 = vmatpush1.bf16.msra.mxu0 %v677
    %1037 = vmatprep.subr.bf16.mxu0 0
    %1038 = vmatpush1.bf16.msra.mxu0 %v680
    %1039 = vmatprep.subr.bf16.mxu0 0
    %1040 = vmatpush1.bf16.msra.mxu0 %v683
    %1041 = vmatprep.subr.bf16.mxu0 0
    %1042 = vmatpush1.bf16.msra.mxu0 %v686
    %1043 = vmatprep.subr.bf16.mxu0 0
    %1044 = vmatpush1.bf16.msra.mxu0 %v689
    %1045 = vmatprep.subr.bf16.mxu0 0
    %1046 = vmatpush1.bf16.msra.mxu0 %v692
    %1047 = vmatprep.subr.bf16.mxu0 0
    %1048 = vmatpush1.bf16.msra.mxu0 %v695
    %1049 = vmatprep.subr.bf16.mxu0 0
    %1050 = vmatpush1.bf16.msra.mxu0 %v698
    %1051 = vmatprep.subr.bf16.mxu0 0
    %1052 = vmatpush1.bf16.msra.mxu0 %v701
    %1053 = vmatprep.subr.bf16.mxu0 0
    %1054 = vmatpush1.bf16.msra.mxu0 %v704
    %1055 = vmatprep.subr.bf16.mxu0 0
    %1056 = vmatpush1.bf16.msra.mxu0 %v707
    %1057 = vmatprep.subr.bf16.mxu0 0
    %1058 = vmatpush1.bf16.msra.mxu0 %v710
    %1059 = vmatprep.subr.bf16.mxu0 0
    %1060 = vmatpush1.bf16.msra.mxu0 %v713
    %1061 = vmatprep.mubr.bf16.mxu0 %v257
    %1062 = vmatmul.mubr.bf16.gmra.mrb[0].mxu0 %v256
    %v1063 = vpop.f32.mrb[0].mxu0
    %v1064 = vadd.f32 %v244, %v1063
    %v1065 = vpop.f32.mrb[0].mxu0
    %v1066 = vpop.f32.mrb[0].mxu0
    %v1067 = vpop.f32.mrb[0].mxu0
    %1068 = vdwg.mxu0
    %1069 = vmatprep.subr.bf16.mxu0 0
    %1070 = vmatpush1.bf16.msra.mxu0 %v716
    %1071 = vmatprep.subr.bf16.mxu0 0
    %1072 = vmatpush1.bf16.msra.mxu0 %v719
    %1073 = vmatprep.subr.bf16.mxu0 0
    %1074 = vmatpush1.bf16.msra.mxu0 %v722
    %1075 = vmatprep.subr.bf16.mxu0 0
    %1076 = vmatpush1.bf16.msra.mxu0 %v725
    %1077 = vmatprep.subr.bf16.mxu0 0
    %1078 = vmatpush1.bf16.msra.mxu0 %v728
    %1079 = vmatprep.subr.bf16.mxu0 0
    %1080 = vmatpush1.bf16.msra.mxu0 %v731
    %1081 = vmatprep.subr.bf16.mxu0 0
    %1082 = vmatpush1.bf16.msra.mxu0 %v734
    %1083 = vmatprep.subr.bf16.mxu0 0
    %1084 = vmatpush1.bf16.msra.mxu0 %v737
    %1085 = vmatprep.subr.bf16.mxu0 0
    %1086 = vmatpush1.bf16.msra.mxu0 %v740
    %1087 = vmatprep.subr.bf16.mxu0 0
    %1088 = vmatpush1.bf16.msra.mxu0 %v743
    %1089 = vmatprep.subr.bf16.mxu0 0
    %1090 = vmatpush1.bf16.msra.mxu0 %v746
    %1091 = vmatprep.subr.bf16.mxu0 0
    %1092 = vmatpush1.bf16.msra.mxu0 %v749
    %1093 = vmatprep.subr.bf16.mxu0 0
    %1094 = vmatpush1.bf16.msra.mxu0 %v752
    %1095 = vmatprep.subr.bf16.mxu0 0
    %1096 = vmatpush1.bf16.msra.mxu0 %v755
    %1097 = vmatprep.subr.bf16.mxu0 0
    %1098 = vmatpush1.bf16.msra.mxu0 %v758
    %1099 = vmatprep.subr.bf16.mxu0 0
    %1100 = vmatpush1.bf16.msra.mxu0 %v761
    %1101 = vmatprep.mubr.bf16.mxu0 %v259
    %1102 = vmatmul.mubr.bf16.gmra.mrb[0].mxu0 %v258
    %v1103 = vpop.f32.mrb[0].mxu0
    %v1104 = vadd.f32 %v1064, %v1103
    %v1105 = vpop.f32.mrb[0].mxu0
    %v1106 = vpop.f32.mrb[0].mxu0
    %v1107 = vpop.f32.mrb[0].mxu0
    %1108 = vdwg.mxu0
    %1109 = vmatprep.subr.bf16.mxu0 0
    %1110 = vmatpush1.bf16.msra.mxu0 %v764
    %1111 = vmatprep.subr.bf16.mxu0 0
    %1112 = vmatpush1.bf16.msra.mxu0 %v767
    %1113 = vmatprep.subr.bf16.mxu0 0
    %1114 = vmatpush1.bf16.msra.mxu0 %v770
    %1115 = vmatprep.subr.bf16.mxu0 0
    %1116 = vmatpush1.bf16.msra.mxu0 %v773
    %1117 = vmatprep.subr.bf16.mxu0 0
    %1118 = vmatpush1.bf16.msra.mxu0 %v776
    %1119 = vmatprep.subr.bf16.mxu0 0
    %1120 = vmatpush1.bf16.msra.mxu0 %v779
    %1121 = vmatprep.subr.bf16.mxu0 0
    %1122 = vmatpush1.bf16.msra.mxu0 %v782
    %1123 = vmatprep.subr.bf16.mxu0 0
    %1124 = vmatpush1.bf16.msra.mxu0 %v785
    %1125 = vmatprep.subr.bf16.mxu0 0
    %1126 = vmatpush1.bf16.msra.mxu0 0
    %1127 = vmatprep.subr.bf16.mxu0 0
    %1128 = vmatpush1.bf16.msra.mxu0 0
    %1129 = vmatprep.subr.bf16.mxu0 0
    %1130 = vmatpush1.bf16.msra.mxu0 0
    %1131 = vmatprep.subr.bf16.mxu0 0
    %1132 = vmatpush1.bf16.msra.mxu0 0
    %1133 = vmatprep.subr.bf16.mxu0 0
    %1134 = vmatpush1.bf16.msra.mxu0 0
    %1135 = vmatprep.subr.bf16.mxu0 0
    %1136 = vmatpush1.bf16.msra.mxu0 0
    %1137 = vmatprep.subr.bf16.mxu0 0
    %1138 = vmatpush1.bf16.msra.mxu0 0
    %1139 = vmatprep.subr.bf16.mxu0 0
    %1140 = vmatpush1.bf16.msra.mxu0 0
    %1141 = vmatprep.mubr.bf16.mxu0 0
    %1142 = vmatmul.mubr.bf16.gmra.mrb[0].mxu0 %v260
    %v1143 = vpop.f32.mrb[0].mxu0
    %v1144 = vadd.f32 %v1104, %v1143
    %v1145 = vpop.f32.mrb[0].mxu0
    %v1146 = vpop.f32.mrb[0].mxu0
    %v1147 = vpop.f32.mrb[0].mxu0
    %1148 = vdwg.mxu0
    %v1149 = vmax.f32 %v1023, 0.0
    %v1150 = vmax.f32 %v1025, 0.0
    %v1151 = vmax.f32 %v1144, 0.0
    %v1152 = vpack.c.bf16 %v1149, %v1149
    %v1153 = vpack.c.bf16 %v1150, %v1150
    %v1154 = vpack.c.bf16 %v1151, %v1151
    %v1155 = vld [vmem:[#allocation4] sm:$0xf]
    %v1156 = vld [vmem:[#allocation4 + $0x4] sm:$0xf]
    %v1157 = vld [vmem:[#allocation4 + $0x8] sm:$0xf]
    %v1158 = vld [vmem:[#allocation4 + $0xc] sm:$0xf]
    %v1159 = vld [vmem:[#allocation4 + $0x10] sm:$0xf]
    %v1160 = vld [vmem:[#allocation4 + $0x14] sm:$0xf]
    %v1161 = vld [vmem:[#allocation4 + $0x18] sm:$0xf]
    %v1162 = vld [vmem:[#allocation4 + $0x1c] sm:$0xf]
    %v1163 = vld [vmem:[#allocation4 + $0x20] sm:$0xf]
    %v1164 = vld [vmem:[#allocation4 + $0x24] sm:$0xf]
    %v1165 = vld [vmem:[#allocation4 + $0x28] sm:$0xf]
    %v1166 = vld [vmem:[#allocation4 + $0x2c] sm:$0xf]
    %v1167 = vld [vmem:[#allocation4 + $0x30] sm:$0xf]
    %v1168 = vld [vmem:[#allocation4 + $0x34] sm:$0xf]
    %v1169 = vld [vmem:[#allocation4 + $0x38] sm:$0xf]
    %v1170 = vld [vmem:[#allocation4 + $0x3c] sm:$0xf]
    %v1171 = vld [vmem:[#allocation4 + $0x40] sm:$0xf]
    %v1172 = vld [vmem:[#allocation4 + $0x44] sm:$0xf]
    %v1173 = vld [vmem:[#allocation4 + $0x48] sm:$0xf]
    %v1174 = vld [vmem:[#allocation4 + $0x4c] sm:$0xf]
    %v1175 = vld [vmem:[#allocation4 + $0x50] sm:$0xf]
    %v1176 = vld [vmem:[#allocation4 + $0x54] sm:$0xf]
    %v1177 = vld [vmem:[#allocation4 + $0x58] sm:$0xf]
    %v1178 = vld [vmem:[#allocation4 + $0x5c] sm:$0xf]
    %v1179 = vld [vmem:[#allocation4 + $0x60] sm:$0xf]
    %v1180 = vld [vmem:[#allocation4 + $0x64] sm:$0xf]
    %v1181 = vld [vmem:[#allocation4 + $0x68] sm:$0xf]
    %v1182 = vld [vmem:[#allocation4 + $0x6c] sm:$0xf]
    %v1183 = vld [vmem:[#allocation4 + $0x70] sm:$0xf]
    %v1184 = vld [vmem:[#allocation4 + $0x74] sm:$0xf]
    %v1185 = vld [vmem:[#allocation4 + $0x78] sm:$0xf]
    %v1186 = vld [vmem:[#allocation4 + $0x7c] sm:$0xf]
    %v1187 = vld [vmem:[#allocation4 + $0x80] sm:$0xf]
    %v1188 = vld [vmem:[#allocation4 + $0x84] sm:$0xf]
    %v1189 = vld [vmem:[#allocation4 + $0x88] sm:$0xf]
    %v1190 = vld [vmem:[#allocation4 + $0x8c] sm:$0xf]
    %v1191 = vld [vmem:[#allocation4 + $0x90] sm:$0xf]
    %v1192 = vld [vmem:[#allocation4 + $0x94] sm:$0xf]
    %v1193 = vld [vmem:[#allocation4 + $0x98] sm:$0xf]
    %v1194 = vld [vmem:[#allocation4 + $0x9c] sm:$0xf]
    %v1195 = vld [vmem:[#allocation4 + $0xa0] sm:$0xf]
    %v1196 = vld [vmem:[#allocation4 + $0xa4] sm:$0xf]
    %v1197 = vld [vmem:[#allocation4 + $0xa8] sm:$0xf]
    %v1198 = vld [vmem:[#allocation4 + $0xac] sm:$0xf]
    %v1199 = vld [vmem:[#allocation4 + $0xb0] sm:$0xf]
    %v1200 = vld [vmem:[#allocation4 + $0xb4] sm:$0xf]
    %v1201 = vld [vmem:[#allocation4 + $0xb8] sm:$0xf]
    %v1202 = vld [vmem:[#allocation4 + $0xbc] sm:$0xf]
    %v1203 = vld [vmem:[%s4] sm:$0x1]
    %v1205 = vlaneseq
    %v1206 = vshrl.u32 %v1205, 7
    %v1207 = vsub.s32 0, %v1206
    %v1208 = vrot.slane %v1203, %v1207
    %v1258 = vunpack.c.l.b16 %v1155
    %v1259 = vunpack.c.l.b16 %v1156
    %v1260 = vunpack.c.l.b16 %v1157
    %v1261 = vunpack.c.l.b16 %v1158
    %v1262 = vunpack.c.l.b16 %v1159
    %v1263 = vunpack.c.l.b16 %v1160
    %v1264 = vunpack.c.l.b16 %v1161
    %v1265 = vunpack.c.l.b16 %v1162
    %v1266 = vunpack.c.l.b16 %v1163
    %v1267 = vunpack.c.l.b16 %v1164
    %v1268 = vunpack.c.l.b16 %v1165
    %v1269 = vunpack.c.l.b16 %v1166
    %v1270 = vunpack.c.l.b16 %v1167
    %v1271 = vunpack.c.l.b16 %v1168
    %v1272 = vunpack.c.l.b16 %v1169
    %v1273 = vunpack.c.l.b16 %v1170
    %v1274 = vunpack.c.l.b16 %v1171
    %v1275 = vunpack.c.l.b16 %v1172
    %v1276 = vunpack.c.l.b16 %v1173
    %v1277 = vunpack.c.l.b16 %v1174
    %v1278 = vunpack.c.l.b16 %v1175
    %v1279 = vunpack.c.l.b16 %v1176
    %v1280 = vunpack.c.l.b16 %v1177
    %v1281 = vunpack.c.l.b16 %v1178
    %v1282 = vunpack.c.l.b16 %v1179
    %v1283 = vunpack.c.l.b16 %v1180
    %v1284 = vunpack.c.l.b16 %v1181
    %v1285 = vunpack.c.l.b16 %v1182
    %v1286 = vunpack.c.l.b16 %v1183
    %v1287 = vunpack.c.l.b16 %v1184
    %v1288 = vunpack.c.l.b16 %v1185
    %v1289 = vunpack.c.l.b16 %v1186
    %v1290 = vunpack.c.l.b16 %v1187
    %v1291 = vunpack.c.l.b16 %v1188
    %v1292 = vunpack.c.l.b16 %v1189
    %v1293 = vunpack.c.l.b16 %v1190
    %v1294 = vunpack.c.l.b16 %v1191
    %v1295 = vunpack.c.l.b16 %v1192
    %v1296 = vunpack.c.l.b16 %v1193
    %v1297 = vunpack.c.l.b16 %v1194
    %v1298 = vunpack.c.l.b16 %v1195
    %v1299 = vunpack.c.l.b16 %v1196
    %v1300 = vunpack.c.l.b16 %v1197
    %v1301 = vunpack.c.l.b16 %v1198
    %v1302 = vunpack.c.l.b16 %v1199
    %v1303 = vunpack.c.l.b16 %v1200
    %v1304 = vunpack.c.l.b16 %v1201
    %v1305 = vunpack.c.l.b16 %v1202
    %v1306 = vpack.c.b16 %v1259, %v1258
    %v1307 = vpack.c.b16 %v1261, %v1260
    %v1308 = vpack.c.b16 %v1263, %v1262
    %v1309 = vpack.c.b16 %v1265, %v1264
    %v1310 = vpack.c.b16 %v1267, %v1266
    %v1311 = vpack.c.b16 %v1269, %v1268
    %v1312 = vpack.c.b16 %v1271, %v1270
    %v1313 = vpack.c.b16 %v1273, %v1272
    %v1314 = vpack.c.b16 %v1275, %v1274
    %v1315 = vpack.c.b16 %v1277, %v1276
    %v1316 = vpack.c.b16 %v1279, %v1278
    %v1317 = vpack.c.b16 %v1281, %v1280
    %v1318 = vpack.c.b16 %v1283, %v1282
    %v1319 = vpack.c.b16 %v1285, %v1284
    %v1320 = vpack.c.b16 %v1287, %v1286
    %v1321 = vpack.c.b16 %v1289, %v1288
    %v1322 = vpack.c.b16 %v1291, %v1290
    %v1323 = vpack.c.b16 %v1293, %v1292
    %v1324 = vpack.c.b16 %v1295, %v1294
    %v1325 = vpack.c.b16 %v1297, %v1296
    %v1326 = vpack.c.b16 %v1299, %v1298
    %v1327 = vpack.c.b16 %v1301, %v1300
    %v1328 = vpack.c.b16 %v1303, %v1302
    %v1329 = vpack.c.b16 %v1305, %v1304
    %1354 = vmatprep.subr.bf16.mxu0 0
    %1355 = vmatpush1.bf16.msra.mxu0 %v1306
    %1356 = vmatprep.subr.bf16.mxu0 0
    %1357 = vmatpush1.bf16.msra.mxu0 %v1307
    %1358 = vmatprep.subr.bf16.mxu0 0
    %1359 = vmatpush1.bf16.msra.mxu0 %v1308
    %1360 = vmatprep.subr.bf16.mxu0 0
    %1361 = vmatpush1.bf16.msra.mxu0 %v1309
    %1362 = vmatprep.subr.bf16.mxu0 0
    %1363 = vmatpush1.bf16.msra.mxu0 %v1310
    %1364 = vmatprep.subr.bf16.mxu0 0
    %1365 = vmatpush1.bf16.msra.mxu0 %v1311
    %1366 = vmatprep.subr.bf16.mxu0 0
    %1367 = vmatpush1.bf16.msra.mxu0 %v1312
    %1368 = vmatprep.subr.bf16.mxu0 0
    %1369 = vmatpush1.bf16.msra.mxu0 %v1313
    %1370 = vmatprep.subr.bf16.mxu0 0
    %1371 = vmatpush1.bf16.msra.mxu0 %v1314
    %1372 = vmatprep.subr.bf16.mxu0 0
    %1373 = vmatpush1.bf16.msra.mxu0 %v1315
    %1374 = vmatprep.subr.bf16.mxu0 0
    %1375 = vmatpush1.bf16.msra.mxu0 %v1316
    %1376 = vmatprep.subr.bf16.mxu0 0
    %1377 = vmatpush1.bf16.msra.mxu0 %v1317
    %1378 = vmatprep.subr.bf16.mxu0 0
    %1379 = vmatpush1.bf16.msra.mxu0 %v1318
    %1380 = vmatprep.subr.bf16.mxu0 0
    %1381 = vmatpush1.bf16.msra.mxu0 %v1319
    %1382 = vmatprep.subr.bf16.mxu0 0
    %1383 = vmatpush1.bf16.msra.mxu0 %v1320
    %1384 = vmatprep.subr.bf16.mxu0 0
    %1385 = vmatpush1.bf16.msra.mxu0 %v1321
    %1386 = vmatprep.mubr.bf16.mxu0 %v1153
    %1387 = vmatmul.mubr.bf16.gmra.mrb[0].mxu0 %v1152
    %v1388 = vpop.f32.mrb[0].mxu0
    %v1389 = vadd.f32 %v1208, %v1388
    %v1390 = vpop.f32.mrb[0].mxu0
    %v1391 = vpop.f32.mrb[0].mxu0
    %v1392 = vpop.f32.mrb[0].mxu0
    %1393 = vdwg.mxu0
    %1394 = vmatprep.subr.bf16.mxu0 0
    %1395 = vmatpush1.bf16.msra.mxu0 %v1322
    %1396 = vmatprep.subr.bf16.mxu0 0
    %1397 = vmatpush1.bf16.msra.mxu0 %v1323
    %1398 = vmatprep.subr.bf16.mxu0 0
    %1399 = vmatpush1.bf16.msra.mxu0 %v1324
    %1400 = vmatprep.subr.bf16.mxu0 0
    %1401 = vmatpush1.bf16.msra.mxu0 %v1325
    %1402 = vmatprep.subr.bf16.mxu0 0
    %1403 = vmatpush1.bf16.msra.mxu0 %v1326
    %1404 = vmatprep.subr.bf16.mxu0 0
    %1405 = vmatpush1.bf16.msra.mxu0 %v1327
    %1406 = vmatprep.subr.bf16.mxu0 0
    %1407 = vmatpush1.bf16.msra.mxu0 %v1328
    %1408 = vmatprep.subr.bf16.mxu0 0
    %1409 = vmatpush1.bf16.msra.mxu0 %v1329
    %1410 = vmatprep.subr.bf16.mxu0 0
    %1411 = vmatpush1.bf16.msra.mxu0 0
    %1412 = vmatprep.subr.bf16.mxu0 0
    %1413 = vmatpush1.bf16.msra.mxu0 0
    %1414 = vmatprep.subr.bf16.mxu0 0
    %1415 = vmatpush1.bf16.msra.mxu0 0
    %1416 = vmatprep.subr.bf16.mxu0 0
    %1417 = vmatpush1.bf16.msra.mxu0 0
    %1418 = vmatprep.subr.bf16.mxu0 0
    %1419 = vmatpush1.bf16.msra.mxu0 0
    %1420 = vmatprep.subr.bf16.mxu0 0
    %1421 = vmatpush1.bf16.msra.mxu0 0
    %1422 = vmatprep.subr.bf16.mxu0 0
    %1423 = vmatpush1.bf16.msra.mxu0 0
    %1424 = vmatprep.subr.bf16.mxu0 0
    %1425 = vmatpush1.bf16.msra.mxu0 0
    %1426 = vmatprep.mubr.bf16.mxu0 0
    %1427 = vmatmul.mubr.bf16.gmra.mrb[0].mxu0 %v1154
    %v1428 = vpop.f32.mrb[0].mxu0
    %v1429 = vadd.f32 %v1389, %v1428
    %v1430 = vpop.f32.mrb[0].mxu0
    %v1431 = vpop.f32.mrb[0].mxu0
    %v1432 = vpop.f32.mrb[0].mxu0
    %1433 = vdwg.mxu0
    %v1434 = vmax.f32 %v1429, 0.0
    %v1435 = vpack.c.bf16 %v1434, %v1434
    %v1436 = vld [vmem:[#allocation6] sm:$0xf]
    %v1437 = vld [vmem:[#allocation6 + $0x4] sm:$0xf]
    %v1438 = vld [vmem:[#allocation6 + $0x8] sm:$0xf]
    %v1439 = vld [vmem:[#allocation6 + $0xc] sm:$0xf]
    %v1440 = vld [vmem:[#allocation6 + $0x10] sm:$0xf]
    %v1441 = vld [vmem:[#allocation6 + $0x14] sm:$0xf]
    %v1442 = vld [vmem:[#allocation6 + $0x18] sm:$0xf]
    %v1443 = vld [vmem:[#allocation6 + $0x1c] sm:$0xf]
    %v1444 = vld [vmem:[#allocation6 + $0x20] sm:$0xf]
    %v1445 = vld [vmem:[#allocation6 + $0x24] sm:$0xf]
    %v1446 = vld [vmem:[#allocation6 + $0x28] sm:$0xf]
    %v1447 = vld [vmem:[#allocation6 + $0x2c] sm:$0xf]
    %v1448 = vld [vmem:[#allocation6 + $0x30] sm:$0xf]
    %v1449 = vld [vmem:[#allocation6 + $0x34] sm:$0xf]
    %v1450 = vld [vmem:[#allocation6 + $0x38] sm:$0xf]
    %v1451 = vld [vmem:[#allocation6 + $0x3c] sm:$0xf]
    %v1452 = vld [vmem:[%s6] sm:$0x1]
    %v1454 = vlaneseq
    %v1455 = vshrl.u32 %v1454, 7
    %v1456 = vsub.s32 0, %v1455
    %v1457 = vrot.slane %v1452, %v1456
    %v1475 = vunpack.c.l.b16 %v1436
    %v1476 = vunpack.c.l.b16 %v1437
    %v1477 = vunpack.c.l.b16 %v1438
    %v1478 = vunpack.c.l.b16 %v1439
    %v1479 = vunpack.c.l.b16 %v1440
    %v1480 = vunpack.c.l.b16 %v1441
    %v1481 = vunpack.c.l.b16 %v1442
    %v1482 = vunpack.c.l.b16 %v1443
    %v1483 = vunpack.c.l.b16 %v1444
    %v1484 = vunpack.c.l.b16 %v1445
    %v1485 = vunpack.c.l.b16 %v1446
    %v1486 = vunpack.c.l.b16 %v1447
    %v1487 = vunpack.c.l.b16 %v1448
    %v1488 = vunpack.c.l.b16 %v1449
    %v1489 = vunpack.c.l.b16 %v1450
    %v1490 = vunpack.c.l.b16 %v1451
    %v1491 = vpack.c.b16 %v1476, %v1475
    %v1492 = vpack.c.b16 %v1478, %v1477
    %v1493 = vpack.c.b16 %v1480, %v1479
    %v1494 = vpack.c.b16 %v1482, %v1481
    %v1495 = vpack.c.b16 %v1484, %v1483
    %v1496 = vpack.c.b16 %v1486, %v1485
    %v1497 = vpack.c.b16 %v1488, %v1487
    %v1498 = vpack.c.b16 %v1490, %v1489
    %1507 = vmatprep.subr.bf16.mxu0 0
    %1508 = vmatpush1.bf16.msra.mxu0 %v1491
    %1509 = vmatprep.subr.bf16.mxu0 0
    %1510 = vmatpush1.bf16.msra.mxu0 %v1492
    %1511 = vmatprep.subr.bf16.mxu0 0
    %1512 = vmatpush1.bf16.msra.mxu0 %v1493
    %1513 = vmatprep.subr.bf16.mxu0 0
    %1514 = vmatpush1.bf16.msra.mxu0 %v1494
    %1515 = vmatprep.subr.bf16.mxu0 0
    %1516 = vmatpush1.bf16.msra.mxu0 %v1495
    %1517 = vmatprep.subr.bf16.mxu0 0
    %1518 = vmatpush1.bf16.msra.mxu0 %v1496
    %1519 = vmatprep.subr.bf16.mxu0 0
    %1520 = vmatpush1.bf16.msra.mxu0 %v1497
    %1521 = vmatprep.subr.bf16.mxu0 0
    %1522 = vmatpush1.bf16.msra.mxu0 %v1498
    %1523 = vmatprep.subr.bf16.mxu0 0
    %1524 = vmatpush1.bf16.msra.mxu0 0
    %1525 = vmatprep.subr.bf16.mxu0 0
    %1526 = vmatpush1.bf16.msra.mxu0 0
    %1527 = vmatprep.subr.bf16.mxu0 0
    %1528 = vmatpush1.bf16.msra.mxu0 0
    %1529 = vmatprep.subr.bf16.mxu0 0
    %1530 = vmatpush1.bf16.msra.mxu0 0
    %1531 = vmatprep.subr.bf16.mxu0 0
    %1532 = vmatpush1.bf16.msra.mxu0 0
    %1533 = vmatprep.subr.bf16.mxu0 0
    %1534 = vmatpush1.bf16.msra.mxu0 0
    %1535 = vmatprep.subr.bf16.mxu0 0
    %1536 = vmatpush1.bf16.msra.mxu0 0
    %1537 = vmatprep.subr.bf16.mxu0 0
    %1538 = vmatpush1.bf16.msra.mxu0 0
    %1539 = vmatprep.mubr.bf16.mxu0 0
    %1540 = vmatmul.mubr.bf16.gmra.mrb[0].mxu0 %v1435
    %v1541 = vpop.f32.mrb[0].mxu0
    %v1542 = vadd.f32 %v1457, %v1541
    %v1543 = vpop.f32.mrb[0].mxu0
    %v1544 = vpop.f32.mrb[0].mxu0
    %v1545 = vpop.f32.mrb[0].mxu0
    %1546 = vdwg.mxu0
    %v1547 = vmax.f32 %v1542, 0.0
    %1548 = vst [vmem:[%s7] sm:$0xff] %v1547
    // Predicated region
    $region42: #{net_purchase_forward.1} parent=1 // pred_check
      _
    $region43: #{net_purchase_forward.1} parent=1 // pred_check_branch
      %1550 = sbr.rel (0) target = $region45
    $region44: #{net_purchase_forward.1} parent=1 // pred_region
      _
    $region45: #{net_purchase_forward.1} parent=1 // pred_fallthru
      _
    // Predicated region
    $region46: #{net_purchase_forward.1} parent=1 // pred_check
      _
    $region47: #{net_purchase_forward.1} parent=1 // pred_check_branch
      %1552 = sbr.rel (0) target = $region49
    $region48: #{net_purchase_forward.1} parent=1 // pred_region
      _
    $region49: #{net_purchase_forward.1} parent=1 // pred_fallthru
      _
    %1553 = vsyncpa [#allocation3], 1
    %1554 = vsyncpa [#allocation5], 1

</llo_original>
